<compile_context>
chip_gen: v7x
topology: tpu7x:2x2x1
jax: 0.10.0
libtpu: 0.0.40
codegen_flags: <defaults>
</compile_context>

<pallas_src>
import functools

import jax
import jax.numpy as jnp
from jax import lax
from jax.experimental import pallas as pl
from jax.experimental.pallas import tpu as pltpu

_NEG = -1e30  # finite "minus infinity" (python float -> no captured constants)


def _round_up(x, m):
    return ((x + m - 1) // m) * m


# --------------------------------------------------------------------------
# Kernel 1: online segment-softmax statistics grouped by source node.
# --------------------------------------------------------------------------
def _softmax_stats_kernel(src_ref, alpha_ref, m_ref, s_ref, *, n_tile):
    """src_ref [1,E_t] i32, alpha_ref [H,E_t] f32 ->
       m_ref/s_ref [H,N_t] f32 resident accumulators (running max / sum-exp)."""
    j = pl.program_id(1)
    _, e_t = alpha_ref.shape
    n_t = m_ref.shape[1]

    @pl.when(j == 0)
    def _init():
        m_ref[...] = jnp.full(m_ref.shape, _NEG, jnp.float32)
        s_ref[...] = jnp.zeros(s_ref.shape, jnp.float32)

    n_lo = pl.program_id(0) * n_tile
    node_ids = lax.broadcasted_iota(jnp.int32, (n_t, e_t), 0) + n_lo
    S = src_ref[...] == node_ids                       # [N_t, E_t] one-hot (bool)
    Sf = S.astype(jnp.float32)

    alpha = alpha_ref[...]                             # [H, E_t]

    # tile-local per-node max over edges (edges on the lane axis, head-batched)
    masked = jnp.where(S[None, :, :], alpha[:, None, :], _NEG)   # [H, N_t, E_t]
    m_old = m_ref[...]
    m_new = jnp.maximum(m_old, jnp.max(masked, axis=2))          # [H, N_t]

    # gather the running max back to this tile's edges via a one-hot matmul:
    #   g[h, e] = m_new[h, src[e]]   (0 for edges whose source is outside the tile)
    g = lax.dot_general(m_new, Sf, (((1,), (0,)), ((), ())),
                        preferred_element_type=jnp.float32)      # [H, E_t]
    # alpha - g <= 0 for in-tile edges; the clamp only protects out-of-tile edges
    # (whose contribution is zeroed by the one-hot matmul below) from exp overflow.
    ex = jnp.exp(jnp.minimum(alpha - g, 0.0))                    # [H, E_t]
    tile_sum = lax.dot_general(ex, Sf, (((1,), (1,)), ((), ())),
                               preferred_element_type=jnp.float32)  # [H, N_t]

    s_ref[...] = s_ref[...] * jnp.exp(m_old - m_new) + tile_sum
    m_ref[...] = m_new


# --------------------------------------------------------------------------
# Kernel 2: scatter the alpha-weighted neighbours to their destination nodes.
# --------------------------------------------------------------------------
def _scatter_kernel(*refs, n_tile, head_dim, agg_type, const_alpha, onehot_dtype):
    """add/mean: dst_ref [1,E_t]  -> one-hot MXU matmul accumulate into out_ref.
       max:      dst_ref [E_t,1]  -> feature-chunked masked running max.
       a_ref [E_t,H] (softmax path only), nbr_ref [E_t,H*D],
       out_ref [N_t,H*D] resident accumulator, cnt_ref [N_t,1] in-degree scratch."""
    if const_alpha is None:
        dst_ref, a_ref, nbr_ref, out_ref, cnt_ref = refs
    else:
        dst_ref, nbr_ref, out_ref, cnt_ref = refs
        a_ref = None

    j = pl.program_id(1)
    n_t, hd = out_ref.shape
    e_t = nbr_ref.shape[0]
    d = head_dim
    h = hd // d

    @pl.when(j == 0)
    def _init():
        fill = _NEG if agg_type == 'max' else 0.0
        out_ref[...] = jnp.full(out_ref.shape, fill, jnp.float32)
        cnt_ref[...] = jnp.zeros(cnt_ref.shape, jnp.float32)

    n_lo = pl.program_id(0) * n_tile

    nbr = nbr_ref[...]                                 # [E_t, H*D]
    if const_alpha is None:
        a = a_ref[...]                                 # [E_t, H]
        if h == 1:
            wh = nbr * a
        else:
            # head-batched, lane-dense weighted neighbours [E_t, H*D]
            wh = jnp.concatenate(
                [nbr[:, k * d:(k + 1) * d] * a[:, k:k + 1] for k in range(h)],
                axis=1)
    else:
        wh = nbr * const_alpha                         # python-float literal

    if agg_type == 'max':
        # one-hot with edges on sublanes so it broadcasts against wh directly
        node_ids = lax.broadcasted_iota(jnp.int32, (n_t, e_t, 1), 0) + n_lo
        hit = dst_ref[...][None, :, :] == node_ids                 # [N_t, E_t, 1]
        cnt_ref[...] += jnp.sum(hit.astype(jnp.float32), axis=1)   # [N_t, 1]
        step = min(hd, 128)   # bounds the [N_t, E_t, step] masked temporary
        for c in range(0, hd, step):
            hi = min(c + step, hd)
            mc = jnp.where(hit, wh[None, :, c:hi], _NEG)           # [N_t, E_t, w]
            out_ref[:, c:hi] = jnp.maximum(out_ref[:, c:hi], jnp.max(mc, axis=1))
    else:
        # one-hot with nodes on sublanes / edges on lanes -> single MXU matmul
        node_ids = lax.broadcasted_iota(jnp.int32, (n_t, e_t), 0) + n_lo
        hit = dst_ref[...] == node_ids                             # [N_t, E_t]
        out_ref[...] += lax.dot_general(
            hit.astype(onehot_dtype), wh.astype(onehot_dtype),
            (((1,), (0,)), ((), ())), preferred_element_type=jnp.float32)
        if agg_type == 'mean':
            cnt_ref[...] += jnp.sum(hit.astype(jnp.float32), axis=1, keepdims=True)

    @pl.when(j == pl.num_programs(1) - 1)
    def _finalize():
        if agg_type == 'mean':
            out_ref[...] = out_ref[...] / jnp.maximum(cnt_ref[...], 1.0)
        elif agg_type == 'max':
            # nodes with no incoming edges -> 0 (torch_scatter behaviour),
            # detected via in-degree count rather than a magic value threshold.
            out_ref[...] = jnp.where(cnt_ref[...] > 0.0, out_ref[...], 0.0)


# --------------------------------------------------------------------------
# Wrapper
# --------------------------------------------------------------------------
def basic_aggregator(neighbor_vecs, alpha, edge_index, num_nodes, *,
                     agg_type='add', num_head=1, onehot_dtype=jnp.float32):
    """JAX/Pallas equivalent of BasicAggregator.forward (eval mode).

    neighbor_vecs: [E, H, D] float
    alpha:         [E, H] float (attention logits) or a python int (plain scale)
    edge_index:    [2, E] int (row 0 = source, row 1 = destination)
    onehot_dtype:  dtype of the scatter one-hot matmul operands
                   (jnp.bfloat16 recommended on v5e/v6e; accumulation stays f32)
    """
    if agg_type == 'sum':
        agg_type = 'add'
    assert agg_type in ('add', 'mean', 'max')
    assert neighbor_vecs.ndim == 3

    E, H, D = neighbor_vecs.shape
    assert H == num_head
    HD = H * D
    N = int(num_nodes)
    const_alpha = float(alpha) if isinstance(alpha, int) else None

    # ---- tiling (VMEM-aware; edges padded to lane multiples, nodes to 128) ----
    e_tile = min(512, _round_up(E, 128))
    while e_tile > 128 and e_tile * HD * 4 > 8 * 2 ** 20:   # keep nbr block <= 8 MiB
        e_tile //= 2
    E_pad = _round_up(E, e_tile)
    N_pad = _round_up(N, 128)
    n_tile = 128
    if agg_type == 'max':            # smaller tiles bound the 3-D masked-max temp
        n_tile_b, e_tile_b = 64, 128
    else:
        n_tile_b, e_tile_b = n_tile, e_tile

    cparams = pltpu.CompilerParams(
        dimension_semantics=("parallel", "arbitrary"),
        vmem_limit_bytes=32 * 1024 * 1024)

    # ---- padded, layout-friendly inputs; padded edges point at node N_pad ----
    # NOTE: indices >= num_nodes are silently dropped (all-false one-hot) instead
    # of raising like torch scatter would.
    pad_e = E_pad - E
    src = jnp.asarray(edge_index[0], jnp.int32).reshape(E)
    dst = jnp.asarray(edge_index[1], jnp.int32).reshape(E)
    src_p = jnp.pad(src, (0, pad_e), constant_values=N_pad)
    dst_p = jnp.pad(dst, (0, pad_e), constant_values=N_pad)
    nbr_flat = jnp.pad(neighbor_vecs.reshape(E, HD).astype(jnp.float32),
                       ((0, pad_e), (0, 0)))

    if const_alpha is None:
        alpha_arr = jnp.asarray(alpha, jnp.float32).reshape(E, H)
        alpha_t = jnp.pad(alpha_arr.T, ((0, 0), (0, pad_e)))          # [H, E_pad]

        # --- kernel 1: per-source-node online-softmax statistics ---
        m, s = pl.pallas_call(
            functools.partial(_softmax_stats_kernel, n_tile=n_tile),
            grid=(N_pad // n_tile, E_pad // e_tile),
            in_specs=[pl.BlockSpec((1, e_tile), lambda i, j: (0, j)),
                      pl.BlockSpec((H, e_tile), lambda i, j: (0, j))],
            out_specs=[pl.BlockSpec((H, n_tile), lambda i, j: (0, i)),
                       pl.BlockSpec((H, n_tile), lambda i, j: (0, i))],
            out_shape=[jax.ShapeDtypeStruct((H, N_pad), jnp.float32),
                       jax.ShapeDtypeStruct((H, N_pad), jnp.float32)],
            compiler_params=cparams,
        )(src_p.reshape(1, E_pad), alpha_t)

        # Tiny O(E*H) per-edge normalisation.  The data-dependent gather of the
        # per-node stats (m[src], s[src]) is not expressible as a BlockSpec, so it
        # is done with plain XLA ops between the two kernels (PyG: +1e-16 in denom).
        m_e = jnp.take(m, src, axis=1)                                # [H, E]
        s_e = jnp.take(s, src, axis=1)
        a_soft = jnp.exp(jnp.minimum(alpha_arr.T - m_e, 0.0)) / (s_e + 1e-16)
        a_soft = jnp.pad(a_soft.T, ((0, pad_e), (0, 0)))              # [E_pad, H]

    # --- kernel 2: weighted scatter to destination nodes ---
    if agg_type == 'max':
        dst_in = dst_p.reshape(E_pad, 1)
        dst_spec = pl.BlockSpec((e_tile_b, 1), lambda i, j: (j, 0))
    else:
        dst_in = dst_p.reshape(1, E_pad)
        dst_spec = pl.BlockSpec((1, e_tile_b), lambda i, j: (0, j))

    in_specs = [dst_spec]
    args = [dst_in]
    if const_alpha is None:
        in_specs.append(pl.BlockSpec((e_tile_b, H), lambda i, j: (j, 0)))
        args.append(a_soft)
    in_specs.append(pl.BlockSpec((e_tile_b, HD), lambda i, j: (j, 0)))
    args.append(nbr_flat)

    out = pl.pallas_call(
        functools.partial(_scatter_kernel, n_tile=n_tile_b, head_dim=D,
                          agg_type=agg_type, const_alpha=const_alpha,
                          onehot_dtype=onehot_dtype),
        grid=(N_pad // n_tile_b, E_pad // e_tile_b),
        in_specs=in_specs,
        out_specs=pl.BlockSpec((n_tile_b, HD), lambda i, j: (i, 0)),
        out_shape=jax.ShapeDtypeStruct((N_pad, HD), jnp.float32),
        scratch_shapes=[pltpu.VMEM((n_tile_b, 1), jnp.float32)],
        compiler_params=cparams,
    )(*args)

    return out[:N].reshape(N, H, D)


# --------------------------------------------------------------------------
# Pure-JAX reference (for validation)
# --------------------------------------------------------------------------
def _reference(neighbor_vecs, alpha, edge_index, num_nodes, num_head, agg_type):
    if agg_type == 'sum':
        agg_type = 'add'
    src, dst = edge_index[0], edge_index[1]
    if isinstance(alpha, int):
        nbr = float(alpha) * neighbor_vecs
    else:
        seg_max = jax.ops.segment_max(alpha, src, num_segments=num_nodes)
        ex = jnp.exp(alpha - seg_max[src])
        seg_sum = jax.ops.segment_sum(ex, src, num_segments=num_nodes)
        a = ex / (seg_sum[src] + 1e-16)
        nbr = neighbor_vecs * a.reshape(-1, num_head, 1)
    if agg_type == 'add':
        return jax.ops.segment_sum(nbr, dst, num_segments=num_nodes)
    cnt = jax.ops.segment_sum(jnp.ones((nbr.shape[0],), jnp.float32), dst,
                              num_segments=num_nodes)
    if agg_type == 'mean':
        ssum = jax.ops.segment_sum(nbr, dst, num_segments=num_nodes)
        return ssum / jnp.maximum(cnt, 1.0)[:, None, None]
    smax = jax.ops.segment_max(nbr, dst, num_segments=num_nodes)
    return jnp.where((cnt > 0.0)[:, None, None], smax, 0.0)


if __name__ == "__main__":
    import numpy as np

    key = jax.random.PRNGKey(0)
    E, H, D, N = 96, 2, 32, 24          # edges, heads, feature dim, nodes
    k1, k2, k3, k4 = jax.random.split(key, 4)

    neighbor_vecs = jax.random.normal(k1, (E, H, D), dtype=jnp.float32)
    alpha = jax.random.normal(k2, (E, H), dtype=jnp.float32)
    src = jax.random.randint(k3, (E,), 0, N, dtype=jnp.int32)
    dst = jax.random.randint(k4, (E,), 0, N, dtype=jnp.int32)
    edge_index = jnp.stack([src, dst])  # [2, E]

    # Tolerances are loose only to stay robust across MXU f32 emulation modes;
    # real bugs (wrong indices / softmax) would produce O(0.1 - 1) errors.
    for agg in ('add', 'mean', 'max'):
        out = jax.block_until_ready(
            basic_aggregator(neighbor_vecs, alpha, edge_index, N,
                             agg_type=agg, num_head=H))
        ref = _reference(neighbor_vecs, alpha, edge_index, N, H, agg)
        np.testing.assert_allclose(np.asarray(out), np.asarray(ref),
                                   rtol=2e-2, atol=3e-2, err_msg=agg)

    # integer-alpha path (plain scaling, no softmax, no alpha shipped to VMEM)
    out_c = jax.block_until_ready(
        basic_aggregator(neighbor_vecs, 2, edge_index, N,
                         agg_type='add', num_head=H))
    ref_c = _reference(neighbor_vecs, 2, edge_index, N, H, 'add')
    np.testing.assert_allclose(np.asarray(out_c), np.asarray(ref_c),
                               rtol=2e-2, atol=3e-2, err_msg='const-alpha')

    # bf16 one-hot matmul variant (recommended MXU dtype on v5e/v6e)
    out_bf = jax.block_until_ready(
        basic_aggregator(neighbor_vecs, alpha, edge_index, N,
                         agg_type='add', num_head=H,
                         onehot_dtype=jnp.bfloat16))
    ref_bf = _reference(neighbor_vecs, alpha, edge_index, N, H, 'add')
    np.testing.assert_allclose(np.asarray(out_bf), np.asarray(ref_bf),
                               rtol=5e-2, atol=8e-2, err_msg='bf16 one-hot')

    print("KERNEL_OK")
</pallas_src>

<mosaic_0001>
module attributes {stable_mosaic.version = 11 : i64} {
  func.func @_softmax_stats_kernel(%arg0: i32, %arg1: i32, %arg2: memref<1x128xi32, #tpu.memory_space<vmem>>, %arg3: memref<2x128xf32, #tpu.memory_space<vmem>>, %arg4: memref<2x128xf32, #tpu.memory_space<vmem>>, %arg5: memref<2x128xf32, #tpu.memory_space<vmem>>) attributes {dimension_semantics = [#tpu.dimension_semantics<parallel>, #tpu.dimension_semantics<arbitrary>], iteration_bounds = array<i64: 1, 1>, scalar_prefetch = 0 : i64, scratch_operands = 0 : i64, tpu.core_type = #tpu.core_type<tc>, window_params = [{transform_indices = @transform_0, window_bounds = array<i64: 1, 128>}, {transform_indices = @transform_1, window_bounds = array<i64: 2, 128>}, {transform_indices = @transform_2, window_bounds = array<i64: 2, 128>}, {transform_indices = @transform_3, window_bounds = array<i64: 2, 128>}]} {
    %c0_i32 = arith.constant 0 : i32
    %0 = arith.cmpi eq, %arg1, %c0_i32 : i32
    %1 = arith.extui %0 : i1 to i32
    %c0_i32_0 = arith.constant 0 : i32
    %2 = arith.cmpi ne, %1, %c0_i32_0 : i32
    scf.if %2 {
      %cst_16 = arith.constant -1.000000e+30 : f32
      %37 = vector.broadcast %cst_16 : f32 to vector<2x128xf32>
      %c0_17 = arith.constant 0 : index
      %c0_18 = arith.constant 0 : index
      %38 = vector.load %arg4[%c0_17, %c0_18] : memref<2x128xf32, #tpu.memory_space<vmem>>, vector<2x128xf32>
      tpu.vector_store %arg4[%c0_17, %c0_18], %37 {strides = array<i32>} : memref<2x128xf32, #tpu.memory_space<vmem>>, vector<2x128xf32>,
      %cst_19 = arith.constant 0.000000e+00 : f32
      %39 = vector.broadcast %cst_19 : f32 to vector<2x128xf32>
      %c0_20 = arith.constant 0 : index
      %c0_21 = arith.constant 0 : index
      %40 = vector.load %arg5[%c0_20, %c0_21] : memref<2x128xf32, #tpu.memory_space<vmem>>, vector<2x128xf32>
      tpu.vector_store %arg5[%c0_20, %c0_21], %39 {strides = array<i32>} : memref<2x128xf32, #tpu.memory_space<vmem>>, vector<2x128xf32>,
    } else {
    }
    %c128_i32 = arith.constant 128 : i32
    %3 = arith.muli %arg0, %c128_i32 : i32
    %4 = tpu.iota {dimensions = array<i32: 0>} : vector<128x128xi32>
    %5 = vector.broadcast %3 : i32 to vector<128x128xi32>
    %6 = arith.addi %4, %5 : vector<128x128xi32>
    %c0 = arith.constant 0 : index
    %c0_1 = arith.constant 0 : index
    %7 = vector.load %arg2[%c0, %c0_1] : memref<1x128xi32, #tpu.memory_space<vmem>>, vector<1x128xi32>
    %8 = vector.broadcast %7 : vector<1x128xi32> to vector<128x128xi32>
    %9 = arith.cmpi eq, %8, %6 : vector<128x128xi32>
    %10 = arith.extui %9 : vector<128x128xi1> to vector<128x128xi32>
    %11 = arith.sitofp %10 : vector<128x128xi32> to vector<128x128xf32>
    %c0_2 = arith.constant 0 : index
    %c0_3 = arith.constant 0 : index
    %12 = vector.load %arg3[%c0_2, %c0_3] : memref<2x128xf32, #tpu.memory_space<vmem>>, vector<2x128xf32>
    %13 = vector.shape_cast %9 : vector<128x128xi1> to vector<1x128x128xi1>
    %14 = vector.shape_cast %12 : vector<2x128xf32> to vector<2x1x128xf32>
    %cst = arith.constant -1.000000e+30 : f32
    %15 = vector.shape_cast %13 : vector<1x128x128xi1> to vector<1x128x128xi1>
    %16 = vector.broadcast %15 : vector<1x128x128xi1> to vector<2x128x128xi1>
    %17 = vector.shape_cast %14 : vector<2x1x128xf32> to vector<2x1x128xf32>
    %18 = vector.broadcast %17 : vector<2x1x128xf32> to vector<2x128x128xf32>
    %19 = vector.broadcast %cst : f32 to vector<2x128x128xf32>
    %20 = arith.select %16, %18, %19 : vector<2x128x128xi1>, vector<2x128x128xf32>
    %c0_4 = arith.constant 0 : index
    %c0_5 = arith.constant 0 : index
    %21 = vector.load %arg4[%c0_4, %c0_5] : memref<2x128xf32, #tpu.memory_space<vmem>>, vector<2x128xf32>
    %cst_6 = arith.constant dense<0xFF800000> : vector<2x128xf32>
    %22 = vector.multi_reduction <maximumf>, %20, %cst_6 [2] : vector<2x128x128xf32> to vector<2x128xf32>
    %23 = arith.maximumf %21, %22 : vector<2x128xf32>
    %cst_7 = arith.constant dense<0.000000e+00> : vector<2x128xf32>
    %24 = tpu.matmul %23, %11, %cst_7 {dimension_numbers = #tpu.dot_dimension_numbers<[1], [0], [0], [1], [0, 0, 1, 1], [], []>} : vector<2x128xf32>, vector<128x128xf32>, vector<2x128xf32> -> vector<2x128xf32>
    %25 = arith.subf %12, %24 : vector<2x128xf32>
    %cst_8 = arith.constant 0.000000e+00 : f32
    %26 = vector.broadcast %cst_8 : f32 to vector<2x128xf32>
    %27 = arith.minimumf %25, %26 : vector<2x128xf32>
    %28 = math.exp %27 : vector<2x128xf32>
    %cst_9 = arith.constant dense<0.000000e+00> : vector<2x128xf32>
    %29 = tpu.matmul %28, %11, %cst_9 {dimension_numbers = #tpu.dot_dimension_numbers<[1], [1], [0], [0], [0, 0, 1, 0], [], []>} : vector<2x128xf32>, vector<128x128xf32>, vector<2x128xf32> -> vector<2x128xf32>
    %c0_10 = arith.constant 0 : index
    %c0_11 = arith.constant 0 : index
    %30 = vector.load %arg5[%c0_10, %c0_11] : memref<2x128xf32, #tpu.memory_space<vmem>>, vector<2x128xf32>
    %31 = arith.subf %21, %23 : vector<2x128xf32>
    %32 = math.exp %31 : vector<2x128xf32>
    %33 = arith.mulf %30, %32 : vector<2x128xf32>
    %34 = arith.addf %33, %29 : vector<2x128xf32>
    %c0_12 = arith.constant 0 : index
    %c0_13 = arith.constant 0 : index
    %35 = vector.load %arg5[%c0_12, %c0_13] : memref<2x128xf32, #tpu.memory_space<vmem>>, vector<2x128xf32>
    tpu.vector_store %arg5[%c0_12, %c0_13], %34 {strides = array<i32>} : memref<2x128xf32, #tpu.memory_space<vmem>>, vector<2x128xf32>,
    %c0_14 = arith.constant 0 : index
    %c0_15 = arith.constant 0 : index
    %36 = vector.load %arg4[%c0_14, %c0_15] : memref<2x128xf32, #tpu.memory_space<vmem>>, vector<2x128xf32>
    tpu.vector_store %arg4[%c0_14, %c0_15], %23 {strides = array<i32>} : memref<2x128xf32, #tpu.memory_space<vmem>>, vector<2x128xf32>,
    return
  }
  func.func @transform_0(%arg0: i32, %arg1: i32) -> (i32, i32) {
    %c0_i32 = arith.constant 0 : i32
    %c0_i32_0 = arith.constant 0 : i32
    return %c0_i32, %arg1 : i32, i32
  }
  func.func @transform_1(%arg0: i32, %arg1: i32) -> (i32, i32) {
    %c0_i32 = arith.constant 0 : i32
    %c0_i32_0 = arith.constant 0 : i32
    return %c0_i32, %arg1 : i32, i32
  }
  func.func @transform_2(%arg0: i32, %arg1: i32) -> (i32, i32) {
    %c0_i32 = arith.constant 0 : i32
    %c0_i32_0 = arith.constant 0 : i32
    return %c0_i32, %arg0 : i32, i32
  }
  func.func @transform_3(%arg0: i32, %arg1: i32) -> (i32, i32) {
    %c0_i32 = arith.constant 0 : i32
    %c0_i32_0 = arith.constant 0 : i32
    return %c0_i32, %arg0 : i32, i32
  }
}

</mosaic_0001>

<llo_original>
// kernel: tpu_custom_call.1
$region0: #{tpu_custom_call.1}
  #allocation0 [shape = 'u32[]', space=smem, size = 0x4, offset = 0x4, fixed_abs, tag = 'smem constant byte address 0x4 - core index']
  #allocation1 [shape = 'u32[144,128]{1,0:T(1,128)}', space=vmem, size = 0x12000, scoped, tag = 'internal scratch']
  %s0 = inlined_call_operand.hbm [shape: s32[1,128], index: 0, kind: input, shape index: {}]
  %s1 = inlined_call_operand.vmem [shape: f32[2,128], index: 1, kind: input, shape index: {}]
  %s2 = inlined_call_operand.hbm [shape: f32[2,128], index: 2, kind: output, shape index: {0}]
  %s3 = inlined_call_operand.hbm [shape: f32[2,128], index: 3, kind: output, shape index: {1}]
  %4 = xla_tuple %s2, %s3
  %s5 = sld [smem:[#allocation0]]
  $region34: #{tpu_custom_call.1} parent=0
    _
  %s7 = ssub.s32 1, %s5
  %s8 = scalar_select 0, %s7, %s5
  $region1: #{tpu_custom_call.1} parent=0
    #allocation2 [shape = 'u8[512]{0}', space=vmem, size = 0x400, scoped, tag = 'input window, operand 0, single buffered']
    #allocation3 [shape = 's32[1]{0}', space=sflag, size = 0x4, scoped, tag = 'scoped memory for tpu_custom_call.1']
    #allocation4 [shape = 's32[1]{0}', space=sflag, size = 0x4, scoped, tag = 'scoped memory for tpu_custom_call.1']
    #allocation5 [shape = 'u8[1024]{0}', space=vmem, size = 0x400, scoped, tag = 'output window, operand 0, single buffered']
    #allocation6 [shape = 'u8[1024]{0}', space=vmem, size = 0x400, scoped, tag = 'output window, operand 1, single buffered']
    #allocation7 [shape = 's32[1]{0}', space=sflag, size = 0x4, scoped, tag = 'scoped memory for tpu_custom_call.1']
    %9 = vsyncpa [#allocation3], 0
    %10 = vsyncpa [#allocation4], 0
    %11 = vsyncpa [#allocation7], 0
    // Predicated region
    $region2: #{tpu_custom_call.1} parent=1 // pred_check
      _
    $region3: #{tpu_custom_call.1} parent=1 // pred_check_branch
      %13 = sbr.rel (0) target = $region5
    $region4: #{tpu_custom_call.1} parent=1 // pred_region
      %s15 = ssub.s32 16, 16
      %16 = vsyncadd [#allocation3], %s15
      %s18 = sshll.u32 [#allocation2], 4
      %s19 = int_to_ptr.vmem [resolvable:$true] %s18
      %21 = dma.hbm_to_vmem [thread:$0]  %s0, 16, %s19, [#allocation3]
    $region5: #{tpu_custom_call.1} parent=1 // pred_fallthru
      _
    // Predicated region
    $region6: #{tpu_custom_call.1} parent=1 // pred_check
      _
    $region7: #{tpu_custom_call.1} parent=1 // pred_check_branch
      %23 = sbr.rel (0) target = $region9
    $region8: #{tpu_custom_call.1} parent=1 // pred_region
      _
    $region9: #{tpu_custom_call.1} parent=1 // pred_fallthru
      _
    // Predicated region
    $region10: #{tpu_custom_call.1} parent=1 // pred_check
      _
    $region11: #{tpu_custom_call.1} parent=1 // pred_check_branch
      %25 = sbr.rel (0) target = $region13
    $region12: #{tpu_custom_call.1} parent=1 // pred_region
      %26 = dma.done [#allocation3], 16
    $region13: #{tpu_custom_call.1} parent=1 // pred_fallthru
      _
    %p27 = scmp.eq.s32.totalorder 0, 0
    // Predicated region
    $region14: #{tpu_custom_call.1} parent=1 // pred_check
      %p28 = pneg %p27
    $region15: #{tpu_custom_call.1} parent=1 // pred_check_branch
      %30 = sbr.rel (%p28) target = $region17
    $region16: #{tpu_custom_call.1} parent=1 // pred_region
      %31 = vst [vmem:[#allocation5] sm:$0x3] -1e+30
      %32 = vst [vmem:[#allocation6] sm:$0x3] 0.0
    $region17: #{tpu_custom_call.1} parent=1 // pred_fallthru
      _
    %s33 = smul.u32 0, 128
    %v34 = vlaneseq
    %v35 = vshrl.u32 %v34, 7
    %v36 = vadd.s32 %v35, 8
    %v37 = vadd.s32 %v35, 16
    %v38 = vadd.s32 %v35, 24
    %v39 = vadd.s32 %v35, 32
    %v40 = vadd.s32 %v35, 40
    %v41 = vadd.s32 %v35, 48
    %v42 = vadd.s32 %v35, 56
    %v43 = vadd.s32 %v35, 64
    %v44 = vadd.s32 %v35, 72
    %v45 = vadd.s32 %v35, 80
    %v46 = vadd.s32 %v35, 88
    %v47 = vadd.s32 %v35, 96
    %v48 = vadd.s32 %v35, 104
    %v49 = vadd.s32 %v35, 112
    %v50 = vadd.s32 %v35, 120
    %v51 = vstv %s33
    %v52 = vadd.s32 %v35, %v51
    %v53 = vadd.s32 %v36, %v51
    %v54 = vadd.s32 %v37, %v51
    %v55 = vadd.s32 %v38, %v51
    %v56 = vadd.s32 %v39, %v51
    %v57 = vadd.s32 %v40, %v51
    %v58 = vadd.s32 %v41, %v51
    %v59 = vadd.s32 %v42, %v51
    %v60 = vadd.s32 %v43, %v51
    %v61 = vadd.s32 %v44, %v51
    %v62 = vadd.s32 %v45, %v51
    %v63 = vadd.s32 %v46, %v51
    %v64 = vadd.s32 %v47, %v51
    %v65 = vadd.s32 %v48, %v51
    %v66 = vadd.s32 %v49, %v51
    %v67 = vadd.s32 %v50, %v51
    %v68 = vld [vmem:[#allocation2] sm:$0x1]
    %v69 = vlaneseq
    %v70 = vshrl.u32 %v69, 7
    %v71 = vsub.s32 0, %v70
    %v72 = vrot.slane %v68, %v71
    %vm73 = vcmp.eq.s32.totalorder %v72, %v52
    %vm74 = vcmp.eq.s32.totalorder %v72, %v53
    %vm75 = vcmp.eq.s32.totalorder %v72, %v54
    %vm76 = vcmp.eq.s32.totalorder %v72, %v55
    %vm77 = vcmp.eq.s32.totalorder %v72, %v56
    %vm78 = vcmp.eq.s32.totalorder %v72, %v57
    %vm79 = vcmp.eq.s32.totalorder %v72, %v58
    %vm80 = vcmp.eq.s32.totalorder %v72, %v59
    %vm81 = vcmp.eq.s32.totalorder %v72, %v60
    %vm82 = vcmp.eq.s32.totalorder %v72, %v61
    %vm83 = vcmp.eq.s32.totalorder %v72, %v62
    %vm84 = vcmp.eq.s32.totalorder %v72, %v63
    %vm85 = vcmp.eq.s32.totalorder %v72, %v64
    %vm86 = vcmp.eq.s32.totalorder %v72, %v65
    %vm87 = vcmp.eq.s32.totalorder %v72, %v66
    %vm88 = vcmp.eq.s32.totalorder %v72, %v67
    %v89 = vsel %vm73, 1, 0
    %v90 = vsel %vm74, 1, 0
    %v91 = vsel %vm75, 1, 0
    %v92 = vsel %vm76, 1, 0
    %v93 = vsel %vm77, 1, 0
    %v94 = vsel %vm78, 1, 0
    %v95 = vsel %vm79, 1, 0
    %v96 = vsel %vm80, 1, 0
    %v97 = vsel %vm81, 1, 0
    %v98 = vsel %vm82, 1, 0
    %v99 = vsel %vm83, 1, 0
    %v100 = vsel %vm84, 1, 0
    %v101 = vsel %vm85, 1, 0
    %v102 = vsel %vm86, 1, 0
    %v103 = vsel %vm87, 1, 0
    %v104 = vsel %vm88, 1, 0
    %v105 = vcvt.s32.f32 %v89
    %v106 = vcvt.s32.f32 %v90
    %v107 = vcvt.s32.f32 %v91
    %v108 = vcvt.s32.f32 %v92
    %v109 = vcvt.s32.f32 %v93
    %v110 = vcvt.s32.f32 %v94
    %v111 = vcvt.s32.f32 %v95
    %v112 = vcvt.s32.f32 %v96
    %v113 = vcvt.s32.f32 %v97
    %v114 = vcvt.s32.f32 %v98
    %v115 = vcvt.s32.f32 %v99
    %v116 = vcvt.s32.f32 %v100
    %v117 = vcvt.s32.f32 %v101
    %v118 = vcvt.s32.f32 %v102
    %v119 = vcvt.s32.f32 %v103
    %v120 = vcvt.s32.f32 %v104
    %v121 = vld [vmem:[%s1] sm:$0x3]
    %v124 = vunpack.c.l.s4 1966171168
    %v125 = vunpack.c.0.s8 %v124
    %v126 = vlaneseq
    %v127 = vshrl.u32 %v126, 7
    %v128 = vsub.s32 %v125, %v127
    %v129 = vrot.slane %v121, %v128
    %v130 = vcombine.high %v129, %v129
    %v132 = vunpack.c.l.s4 1966171168
    %v133 = vunpack.c.0.s8 %v132
    %v134 = vlaneseq
    %v135 = vshrl.u32 %v134, 7
    %v136 = vsub.s32 %v133, %v135
    %v137 = vrot.slane %v129, %v136
    %v139 = vunpack.c.l.s4 1966171168
    %v140 = vunpack.c.0.s8 %v139
    %v141 = vlaneseq
    %v142 = vshrl.u32 %v141, 7
    %v143 = vsub.s32 %v140, %v142
    %v144 = vrot.slane %v130, %v143
    %vm145 = vcmp.eq.s32.totalorder %v89, 1
    %vm146 = vcmp.eq.s32.totalorder %v90, 1
    %vm147 = vcmp.eq.s32.totalorder %v91, 1
    %vm148 = vcmp.eq.s32.totalorder %v92, 1
    %vm149 = vcmp.eq.s32.totalorder %v93, 1
    %vm150 = vcmp.eq.s32.totalorder %v94, 1
    %vm151 = vcmp.eq.s32.totalorder %v95, 1
    %vm152 = vcmp.eq.s32.totalorder %v96, 1
    %vm153 = vcmp.eq.s32.totalorder %v97, 1
    %vm154 = vcmp.eq.s32.totalorder %v98, 1
    %vm155 = vcmp.eq.s32.totalorder %v99, 1
    %vm156 = vcmp.eq.s32.totalorder %v100, 1
    %vm157 = vcmp.eq.s32.totalorder %v101, 1
    %vm158 = vcmp.eq.s32.totalorder %v102, 1
    %vm159 = vcmp.eq.s32.totalorder %v103, 1
    %vm160 = vcmp.eq.s32.totalorder %v104, 1
    %v161 = vlaneseq
    %v162 = vshrl.u32 %v161, 7
    %v163 = vsub.s32 0, %v162
    %v164 = vrot.slane %v137, %v163
    %v165 = vlaneseq
    %v166 = vshrl.u32 %v165, 7
    %v167 = vsub.s32 0, %v166
    %v168 = vrot.slane %v144, %v167
    %v171 = vsel %vm145, %v164, -1e+30
    %v172 = vsel %vm146, %v164, -1e+30
    %v173 = vsel %vm147, %v164, -1e+30
    %v174 = vsel %vm148, %v164, -1e+30
    %v175 = vsel %vm149, %v164, -1e+30
    %v176 = vsel %vm150, %v164, -1e+30
    %v177 = vsel %vm151, %v164, -1e+30
    %v178 = vsel %vm152, %v164, -1e+30
    %v179 = vsel %vm153, %v164, -1e+30
    %v180 = vsel %vm154, %v164, -1e+30
    %v181 = vsel %vm155, %v164, -1e+30
    %v182 = vsel %vm156, %v164, -1e+30
    %v183 = vsel %vm157, %v164, -1e+30
    %v184 = vsel %vm158, %v164, -1e+30
    %v185 = vsel %vm159, %v164, -1e+30
    %v186 = vsel %vm160, %v164, -1e+30
    %v187 = vsel %vm145, %v168, -1e+30
    %v188 = vsel %vm146, %v168, -1e+30
    %v189 = vsel %vm147, %v168, -1e+30
    %v190 = vsel %vm148, %v168, -1e+30
    %v191 = vsel %vm149, %v168, -1e+30
    %v192 = vsel %vm150, %v168, -1e+30
    %v193 = vsel %vm151, %v168, -1e+30
    %v194 = vsel %vm152, %v168, -1e+30
    %v195 = vsel %vm153, %v168, -1e+30
    %v196 = vsel %vm154, %v168, -1e+30
    %v197 = vsel %vm155, %v168, -1e+30
    %v198 = vsel %vm156, %v168, -1e+30
    %v199 = vsel %vm157, %v168, -1e+30
    %v200 = vsel %vm158, %v168, -1e+30
    %v201 = vsel %vm159, %v168, -1e+30
    %v202 = vsel %vm160, %v168, -1e+30
    %v203 = vld [vmem:[#allocation5] sm:$0x3]
    %204 = vmax.xlane.f32.xlu0 %v171
    %v205 = vpop.xlane.xlu0 %204
    %206 = vmax.xlane.f32.xlu0 %v172
    %v207 = vpop.xlane.xlu0 %206
    %208 = vmax.xlane.f32.xlu0 %v173
    %v209 = vpop.xlane.xlu0 %208
    %210 = vmax.xlane.f32.xlu0 %v174
    %v211 = vpop.xlane.xlu0 %210
    %212 = vmax.xlane.f32.xlu0 %v175
    %v213 = vpop.xlane.xlu0 %212
    %214 = vmax.xlane.f32.xlu0 %v176
    %v215 = vpop.xlane.xlu0 %214
    %216 = vmax.xlane.f32.xlu0 %v177
    %v217 = vpop.xlane.xlu0 %216
    %218 = vmax.xlane.f32.xlu0 %v178
    %v219 = vpop.xlane.xlu0 %218
    %220 = vmax.xlane.f32.xlu0 %v179
    %v221 = vpop.xlane.xlu0 %220
    %222 = vmax.xlane.f32.xlu0 %v180
    %v223 = vpop.xlane.xlu0 %222
    %224 = vmax.xlane.f32.xlu0 %v181
    %v225 = vpop.xlane.xlu0 %224
    %226 = vmax.xlane.f32.xlu0 %v182
    %v227 = vpop.xlane.xlu0 %226
    %228 = vmax.xlane.f32.xlu0 %v183
    %v229 = vpop.xlane.xlu0 %228
    %230 = vmax.xlane.f32.xlu0 %v184
    %v231 = vpop.xlane.xlu0 %230
    %232 = vmax.xlane.f32.xlu0 %v185
    %v233 = vpop.xlane.xlu0 %232
    %234 = vmax.xlane.f32.xlu0 %v186
    %v235 = vpop.xlane.xlu0 %234
    %236 = vmax.xlane.f32.xlu0 %v187
    %v237 = vpop.xlane.xlu0 %236
    %238 = vmax.xlane.f32.xlu0 %v188
    %v239 = vpop.xlane.xlu0 %238
    %240 = vmax.xlane.f32.xlu0 %v189
    %v241 = vpop.xlane.xlu0 %240
    %242 = vmax.xlane.f32.xlu0 %v190
    %v243 = vpop.xlane.xlu0 %242
    %244 = vmax.xlane.f32.xlu0 %v191
    %v245 = vpop.xlane.xlu0 %244
    %246 = vmax.xlane.f32.xlu0 %v192
    %v247 = vpop.xlane.xlu0 %246
    %248 = vmax.xlane.f32.xlu0 %v193
    %v249 = vpop.xlane.xlu0 %248
    %250 = vmax.xlane.f32.xlu0 %v194
    %v251 = vpop.xlane.xlu0 %250
    %252 = vmax.xlane.f32.xlu0 %v195
    %v253 = vpop.xlane.xlu0 %252
    %254 = vmax.xlane.f32.xlu0 %v196
    %v255 = vpop.xlane.xlu0 %254
    %256 = vmax.xlane.f32.xlu0 %v197
    %v257 = vpop.xlane.xlu0 %256
    %258 = vmax.xlane.f32.xlu0 %v198
    %v259 = vpop.xlane.xlu0 %258
    %260 = vmax.xlane.f32.xlu0 %v199
    %v261 = vpop.xlane.xlu0 %260
    %262 = vmax.xlane.f32.xlu0 %v200
    %v263 = vpop.xlane.xlu0 %262
    %264 = vmax.xlane.f32.xlu0 %v201
    %v265 = vpop.xlane.xlu0 %264
    %266 = vmax.xlane.f32.xlu0 %v202
    %v267 = vpop.xlane.xlu0 %266
    %v300 = vlaneseq
    %v301 = vand.u32 %v300, 127
    %v302 = vlaneseq
    %v303 = vshrl.u32 %v302, 7
    %v304 = vsub.s32 %v301, %v303
    %v305 = vrot.slane %v205, %v304
    %v306 = vadd.s32 %v301, 4294967288
    %v307 = vlaneseq
    %v308 = vshrl.u32 %v307, 7
    %v309 = vsub.s32 %v306, %v308
    %v310 = vrot.slane %v207, %v309
    %vm311 = vcmask 130112
    %v312 = vsel %vm311, %v310, %v305
    %v313 = vadd.s32 %v301, 4294967280
    %v314 = vlaneseq
    %v315 = vshrl.u32 %v314, 7
    %v316 = vsub.s32 %v313, %v315
    %v317 = vrot.slane %v209, %v316
    %vm318 = vcmask 195712
    %v319 = vsel %vm318, %v317, %v312
    %v320 = vadd.s32 %v301, 4294967272
    %v321 = vlaneseq
    %v322 = vshrl.u32 %v321, 7
    %v323 = vsub.s32 %v320, %v322
    %v324 = vrot.slane %v211, %v323
    %vm325 = vcmask 261312
    %v326 = vsel %vm325, %v324, %v319
    %v327 = vadd.s32 %v301, 4294967264
    %v328 = vlaneseq
    %v329 = vshrl.u32 %v328, 7
    %v330 = vsub.s32 %v327, %v329
    %v331 = vrot.slane %v213, %v330
    %vm332 = vcmask 326912
    %v333 = vsel %vm332, %v331, %v326
    %v334 = vadd.s32 %v301, 4294967256
    %v335 = vlaneseq
    %v336 = vshrl.u32 %v335, 7
    %v337 = vsub.s32 %v334, %v336
    %v338 = vrot.slane %v215, %v337
    %vm339 = vcmask 392512
    %v340 = vsel %vm339, %v338, %v333
    %v341 = vadd.s32 %v301, 4294967248
    %v342 = vlaneseq
    %v343 = vshrl.u32 %v342, 7
    %v344 = vsub.s32 %v341, %v343
    %v345 = vrot.slane %v217, %v344
    %vm346 = vcmask 458112
    %v347 = vsel %vm346, %v345, %v340
    %v348 = vadd.s32 %v301, 4294967240
    %v349 = vlaneseq
    %v350 = vshrl.u32 %v349, 7
    %v351 = vsub.s32 %v348, %v350
    %v352 = vrot.slane %v219, %v351
    %vm353 = vcmask 523712
    %v354 = vsel %vm353, %v352, %v347
    %v355 = vadd.s32 %v301, 4294967232
    %v356 = vlaneseq
    %v357 = vshrl.u32 %v356, 7
    %v358 = vsub.s32 %v355, %v357
    %v359 = vrot.slane %v221, %v358
    %vm360 = vcmask 589312
    %v361 = vsel %vm360, %v359, %v354
    %v362 = vadd.s32 %v301, 4294967224
    %v363 = vlaneseq
    %v364 = vshrl.u32 %v363, 7
    %v365 = vsub.s32 %v362, %v364
    %v366 = vrot.slane %v223, %v365
    %vm367 = vcmask 654912
    %v368 = vsel %vm367, %v366, %v361
    %v369 = vadd.s32 %v301, 4294967216
    %v370 = vlaneseq
    %v371 = vshrl.u32 %v370, 7
    %v372 = vsub.s32 %v369, %v371
    %v373 = vrot.slane %v225, %v372
    %vm374 = vcmask 720512
    %v375 = vsel %vm374, %v373, %v368
    %v376 = vadd.s32 %v301, 4294967208
    %v377 = vlaneseq
    %v378 = vshrl.u32 %v377, 7
    %v379 = vsub.s32 %v376, %v378
    %v380 = vrot.slane %v227, %v379
    %vm381 = vcmask 786112
    %v382 = vsel %vm381, %v380, %v375
    %v383 = vadd.s32 %v301, 4294967200
    %v384 = vlaneseq
    %v385 = vshrl.u32 %v384, 7
    %v386 = vsub.s32 %v383, %v385
    %v387 = vrot.slane %v229, %v386
    %vm388 = vcmask 851712
    %v389 = vsel %vm388, %v387, %v382
    %v390 = vadd.s32 %v301, 4294967192
    %v391 = vlaneseq
    %v392 = vshrl.u32 %v391, 7
    %v393 = vsub.s32 %v390, %v392
    %v394 = vrot.slane %v231, %v393
    %vm395 = vcmask 917312
    %v396 = vsel %vm395, %v394, %v389
    %v397 = vadd.s32 %v301, 4294967184
    %v398 = vlaneseq
    %v399 = vshrl.u32 %v398, 7
    %v400 = vsub.s32 %v397, %v399
    %v401 = vrot.slane %v233, %v400
    %vm402 = vcmask 982912
    %v403 = vsel %vm402, %v401, %v396
    %v404 = vadd.s32 %v301, 4294967176
    %v405 = vlaneseq
    %v406 = vshrl.u32 %v405, 7
    %v407 = vsub.s32 %v404, %v406
    %v408 = vrot.slane %v235, %v407
    %vm409 = vcmask 1048512
    %v410 = vsel %vm409, %v408, %v403
    %v411 = vlaneseq
    %v412 = vshrl.u32 %v411, 7
    %v413 = vsub.s32 %v301, %v412
    %v414 = vrot.slane %v237, %v413
    %v415 = vlaneseq
    %v416 = vshrl.u32 %v415, 7
    %v417 = vsub.s32 %v306, %v416
    %v418 = vrot.slane %v239, %v417
    %v419 = vsel %vm311, %v418, %v414
    %v420 = vlaneseq
    %v421 = vshrl.u32 %v420, 7
    %v422 = vsub.s32 %v313, %v421
    %v423 = vrot.slane %v241, %v422
    %v424 = vsel %vm318, %v423, %v419
    %v425 = vlaneseq
    %v426 = vshrl.u32 %v425, 7
    %v427 = vsub.s32 %v320, %v426
    %v428 = vrot.slane %v243, %v427
    %v429 = vsel %vm325, %v428, %v424
    %v430 = vlaneseq
    %v431 = vshrl.u32 %v430, 7
    %v432 = vsub.s32 %v327, %v431
    %v433 = vrot.slane %v245, %v432
    %v434 = vsel %vm332, %v433, %v429
    %v435 = vlaneseq
    %v436 = vshrl.u32 %v435, 7
    %v437 = vsub.s32 %v334, %v436
    %v438 = vrot.slane %v247, %v437
    %v439 = vsel %vm339, %v438, %v434
    %v440 = vlaneseq
    %v441 = vshrl.u32 %v440, 7
    %v442 = vsub.s32 %v341, %v441
    %v443 = vrot.slane %v249, %v442
    %v444 = vsel %vm346, %v443, %v439
    %v445 = vlaneseq
    %v446 = vshrl.u32 %v445, 7
    %v447 = vsub.s32 %v348, %v446
    %v448 = vrot.slane %v251, %v447
    %v449 = vsel %vm353, %v448, %v444
    %v450 = vlaneseq
    %v451 = vshrl.u32 %v450, 7
    %v452 = vsub.s32 %v355, %v451
    %v453 = vrot.slane %v253, %v452
    %v454 = vsel %vm360, %v453, %v449
    %v455 = vlaneseq
    %v456 = vshrl.u32 %v455, 7
    %v457 = vsub.s32 %v362, %v456
    %v458 = vrot.slane %v255, %v457
    %v459 = vsel %vm367, %v458, %v454
    %v460 = vlaneseq
    %v461 = vshrl.u32 %v460, 7
    %v462 = vsub.s32 %v369, %v461
    %v463 = vrot.slane %v257, %v462
    %v464 = vsel %vm374, %v463, %v459
    %v465 = vlaneseq
    %v466 = vshrl.u32 %v465, 7
    %v467 = vsub.s32 %v376, %v466
    %v468 = vrot.slane %v259, %v467
    %v469 = vsel %vm381, %v468, %v464
    %v470 = vlaneseq
    %v471 = vshrl.u32 %v470, 7
    %v472 = vsub.s32 %v383, %v471
    %v473 = vrot.slane %v261, %v472
    %v474 = vsel %vm388, %v473, %v469
    %v475 = vlaneseq
    %v476 = vshrl.u32 %v475, 7
    %v477 = vsub.s32 %v390, %v476
    %v478 = vrot.slane %v263, %v477
    %v479 = vsel %vm395, %v478, %v474
    %v480 = vlaneseq
    %v481 = vshrl.u32 %v480, 7
    %v482 = vsub.s32 %v397, %v481
    %v483 = vrot.slane %v265, %v482
    %v484 = vsel %vm402, %v483, %v479
    %v485 = vlaneseq
    %v486 = vshrl.u32 %v485, 7
    %v487 = vsub.s32 %v404, %v486
    %v488 = vrot.slane %v267, %v487
    %v489 = vsel %vm409, %v488, %v484
    %vm490 = vcmask 1041409
    %v491 = vsel %vm490, %v489, %v410
    %v493 = vmax.f32 %v203, %v491
    %494 = vmatprep.subr.mxu0 0.0
    %495 = vmatpush1.msra.mxu0 %v105
    %496 = vmatprep.subr.mxu0 0.0
    %497 = vmatpush1.msra.mxu0 %v106
    %498 = vmatprep.subr.mxu0 0.0
    %499 = vmatpush1.msra.mxu0 %v107
    %500 = vmatprep.subr.mxu0 0.0
    %501 = vmatpush1.msra.mxu0 %v108
    %502 = vmatprep.subr.mxu0 0.0
    %503 = vmatpush1.msra.mxu0 %v109
    %504 = vmatprep.subr.mxu0 0.0
    %505 = vmatpush1.msra.mxu0 %v110
    %506 = vmatprep.subr.mxu0 0.0
    %507 = vmatpush1.msra.mxu0 %v111
    %508 = vmatprep.subr.mxu0 0.0
    %509 = vmatpush1.msra.mxu0 %v112
    %510 = vmatprep.subr.mxu0 0.0
    %511 = vmatpush1.msra.mxu0 %v113
    %512 = vmatprep.subr.mxu0 0.0
    %513 = vmatpush1.msra.mxu0 %v114
    %514 = vmatprep.subr.mxu0 0.0
    %515 = vmatpush1.msra.mxu0 %v115
    %516 = vmatprep.subr.mxu0 0.0
    %517 = vmatpush1.msra.mxu0 %v116
    %518 = vmatprep.subr.mxu0 0.0
    %519 = vmatpush1.msra.mxu0 %v117
    %520 = vmatprep.subr.mxu0 0.0
    %521 = vmatpush1.msra.mxu0 %v118
    %522 = vmatprep.subr.mxu0 0.0
    %523 = vmatpush1.msra.mxu0 %v119
    %524 = vmatprep.subr.mxu0 0.0
    %525 = vmatpush1.msra.mxu0 %v120
    %526 = vmatprep.subr.mxu0 0.0
    %527 = vmatpush1.msra.mxu0 0.0
    %528 = vmatprep.subr.mxu0 0.0
    %529 = vmatpush1.msra.mxu0 0.0
    %530 = vmatprep.subr.mxu0 0.0
    %531 = vmatpush1.msra.mxu0 0.0
    %532 = vmatprep.subr.mxu0 0.0
    %533 = vmatpush1.msra.mxu0 0.0
    %534 = vmatprep.subr.mxu0 0.0
    %535 = vmatpush1.msra.mxu0 0.0
    %536 = vmatprep.subr.mxu0 0.0
    %537 = vmatpush1.msra.mxu0 0.0
    %538 = vmatprep.subr.mxu0 0.0
    %539 = vmatpush1.msra.mxu0 0.0
    %540 = vmatprep.subr.mxu0 0.0
    %541 = vmatpush1.msra.mxu0 0.0
    %542 = vmatprep.subr.mxu0 0.0
    %543 = vmatpush1.msra.mxu0 0.0
    %544 = vmatprep.subr.mxu0 0.0
    %545 = vmatpush1.msra.mxu0 0.0
    %546 = vmatprep.subr.mxu0 0.0
    %547 = vmatpush1.msra.mxu0 0.0
    %548 = vmatprep.subr.mxu0 0.0
    %549 = vmatpush1.msra.mxu0 0.0
    %550 = vmatprep.subr.mxu0 0.0
    %551 = vmatpush1.msra.mxu0 0.0
    %552 = vmatprep.subr.mxu0 0.0
    %553 = vmatpush1.msra.mxu0 0.0
    %554 = vmatprep.subr.mxu0 0.0
    %555 = vmatpush1.msra.mxu0 0.0
    %556 = vmatprep.subr.mxu0 0.0
    %557 = vmatpush1.msra.mxu0 0.0
    %558 = vmatprep.mubr.f32.mxu0 0.0
    %559 = vmatmul.mubr.f32.gmra.mrb[0].mxu0 %v493
    %v560 = vpop.f32.mrb[0].mxu0
    %v561 = vadd.f32 0.0, %v560
    %v562 = vpop.f32.mrb[0].mxu0
    %563 = vdwg.mxu0
    %v564 = vsub.f32 %v121, %v561
    %v565 = vmin.f32 %v564, 0.0
    %v566 = vmul.f32 %v565, 1.442695
    %v567 = vpow.pop %v566
    %568 = vmatprep.subr.mxu0 0.0
    %569 = vmatpush1.xpose.msra.mxu0 %v105
    %570 = vmatprep.subr.mxu0 0.0
    %571 = vmatpush1.xpose.msra.mxu0 %v106
    %572 = vmatprep.subr.mxu0 0.0
    %573 = vmatpush1.xpose.msra.mxu0 %v107
    %574 = vmatprep.subr.mxu0 0.0
    %575 = vmatpush1.xpose.msra.mxu0 %v108
    %576 = vmatprep.subr.mxu0 0.0
    %577 = vmatpush1.xpose.msra.mxu0 %v109
    %578 = vmatprep.subr.mxu0 0.0
    %579 = vmatpush1.xpose.msra.mxu0 %v110
    %580 = vmatprep.subr.mxu0 0.0
    %581 = vmatpush1.xpose.msra.mxu0 %v111
    %582 = vmatprep.subr.mxu0 0.0
    %583 = vmatpush1.xpose.msra.mxu0 %v112
    %584 = vmatprep.subr.mxu0 0.0
    %585 = vmatpush1.xpose.msra.mxu0 %v113
    %586 = vmatprep.subr.mxu0 0.0
    %587 = vmatpush1.xpose.msra.mxu0 %v114
    %588 = vmatprep.subr.mxu0 0.0
    %589 = vmatpush1.xpose.msra.mxu0 %v115
    %590 = vmatprep.subr.mxu0 0.0
    %591 = vmatpush1.xpose.msra.mxu0 %v116
    %592 = vmatprep.subr.mxu0 0.0
    %593 = vmatpush1.xpose.msra.mxu0 %v117
    %594 = vmatprep.subr.mxu0 0.0
    %595 = vmatpush1.xpose.msra.mxu0 %v118
    %596 = vmatprep.subr.mxu0 0.0
    %597 = vmatpush1.xpose.msra.mxu0 %v119
    %598 = vmatprep.subr.mxu0 0.0
    %599 = vmatpush1.xpose.msra.mxu0 %v120
    %600 = vmatprep.subr.mxu0 0.0
    %601 = vmatpush1.xpose.msra.mxu0 0.0
    %602 = vmatprep.subr.mxu0 0.0
    %603 = vmatpush1.xpose.msra.mxu0 0.0
    %604 = vmatprep.subr.mxu0 0.0
    %605 = vmatpush1.xpose.msra.mxu0 0.0
    %606 = vmatprep.subr.mxu0 0.0
    %607 = vmatpush1.xpose.msra.mxu0 0.0
    %608 = vmatprep.subr.mxu0 0.0
    %609 = vmatpush1.xpose.msra.mxu0 0.0
    %610 = vmatprep.subr.mxu0 0.0
    %611 = vmatpush1.xpose.msra.mxu0 0.0
    %612 = vmatprep.subr.mxu0 0.0
    %613 = vmatpush1.xpose.msra.mxu0 0.0
    %614 = vmatprep.subr.mxu0 0.0
    %615 = vmatpush1.xpose.msra.mxu0 0.0
    %616 = vmatprep.subr.mxu0 0.0
    %617 = vmatpush1.xpose.msra.mxu0 0.0
    %618 = vmatprep.subr.mxu0 0.0
    %619 = vmatpush1.xpose.msra.mxu0 0.0
    %620 = vmatprep.subr.mxu0 0.0
    %621 = vmatpush1.xpose.msra.mxu0 0.0
    %622 = vmatprep.subr.mxu0 0.0
    %623 = vmatpush1.xpose.msra.mxu0 0.0
    %624 = vmatprep.subr.mxu0 0.0
    %625 = vmatpush1.xpose.msra.mxu0 0.0
    %626 = vmatprep.subr.mxu0 0.0
    %627 = vmatpush1.xpose.msra.mxu0 0.0
    %628 = vmatprep.subr.mxu0 0.0
    %629 = vmatpush1.xpose.msra.mxu0 0.0
    %630 = vmatprep.subr.mxu0 0.0
    %631 = vmatpush1.xpose.msra.mxu0 0.0
    %632 = vmatprep.mubr.f32.mxu0 0.0
    %633 = vmatmul.mubr.f32.gmra.mrb[0].mxu0 %v567
    %v634 = vpop.f32.mrb[0].mxu0
    %v635 = vadd.f32 0.0, %v634
    %v636 = vpop.f32.mrb[0].mxu0
    %637 = vdwg.mxu0
    %v638 = vld [vmem:[#allocation6] sm:$0x3]
    %v639 = vsub.f32 %v203, %v493
    %v640 = vmul.f32 %v639, 1.442695
    %v641 = vpow.pop %v640
    %v642 = vmul.f32 %v638, %v641
    %v643 = vadd.f32 %v642, %v635
    %644 = vst [vmem:[#allocation6] sm:$0x3] %v643
    %645 = vst [vmem:[#allocation5] sm:$0x3] %v493
    // Predicated region
    $region18: #{tpu_custom_call.1} parent=1 // pred_check
      _
    $region19: #{tpu_custom_call.1} parent=1 // pred_check_branch
      %647 = sbr.rel (0) target = $region21
    $region20: #{tpu_custom_call.1} parent=1 // pred_region
      %s649 = ssub.s32 32, 32
      %650 = vsyncadd [#allocation4], %s649
      %s652 = sshll.u32 [#allocation5], 4
      %s653 = int_to_ptr.vmem [resolvable:$true] %s652
      %655 = dma.vmem_to_hbm [thread:$0]  %s653, 32, %s2, [#allocation4]
    $region21: #{tpu_custom_call.1} parent=1 // pred_fallthru
      _
    // Predicated region
    $region22: #{tpu_custom_call.1} parent=1 // pred_check
      _
    $region23: #{tpu_custom_call.1} parent=1 // pred_check_branch
      %657 = sbr.rel (0) target = $region25
    $region24: #{tpu_custom_call.1} parent=1 // pred_region
      %s659 = ssub.s32 32, 32
      %660 = vsyncadd [#allocation7], %s659
      %s662 = sshll.u32 [#allocation6], 4
      %s663 = int_to_ptr.vmem [resolvable:$true] %s662
      %665 = dma.vmem_to_hbm [thread:$0]  %s663, 32, %s3, [#allocation7]
    $region25: #{tpu_custom_call.1} parent=1 // pred_fallthru
      _
    // Predicated region
    $region26: #{tpu_custom_call.1} parent=1 // pred_check
      _
    $region27: #{tpu_custom_call.1} parent=1 // pred_check_branch
      %667 = sbr.rel (0) target = $region29
    $region28: #{tpu_custom_call.1} parent=1 // pred_region
      %668 = dma.done [#allocation4], 32
    $region29: #{tpu_custom_call.1} parent=1 // pred_fallthru
      _
    // Predicated region
    $region30: #{tpu_custom_call.1} parent=1 // pred_check
      _
    $region31: #{tpu_custom_call.1} parent=1 // pred_check_branch
      %670 = sbr.rel (0) target = $region33
    $region32: #{tpu_custom_call.1} parent=1 // pred_region
      %671 = dma.done [#allocation7], 32
    $region33: #{tpu_custom_call.1} parent=1 // pred_fallthru
      _
    %672 = vsyncpa [#allocation3], 1
    %673 = vsyncpa [#allocation4], 1
    %674 = vsyncpa [#allocation7], 1

</llo_original>
